<compile_context>
chip_gen: v7x
topology: tpu7x:2x2x1
jax: 0.10.0
libtpu: 0.0.40
codegen_flags: <defaults>
</compile_context>

<pallas_src>
import math

import jax
import jax.numpy as jnp
from jax.experimental import pallas as pl
from jax.experimental.pallas import tpu as pltpu

_LANE = 128
_TARGET_BYTES = 4 * 1024 * 1024   # ~4 MiB per data block (in and out)
_MAX_BN = 512                     # cap batch rows per block (scale-block budget)


def _round_up(v, m):
    return (v + m - 1) // m * m


def _sd_kernel(src_ref, scale_ref, x_ref, o_ref):
    # src_ref: (nb,) int32 SMEM table, consumed only by the index_maps.
    # scale_ref: (bn, 1) f32; x_ref / o_ref: (bn, tf)
    del src_ref
    o_ref[...] = x_ref[...] * scale_ref[...].astype(x_ref.dtype)


def _choose_tiles(n, f, itemsize):
    """Pick (bn, tf): sublane/lane dense blocks of ~_TARGET_BYTES."""
    sub = max(8, 32 // itemsize)            # rows per packed sublane tile (dtype-aware)
    row_bytes = _round_up(f, _LANE) * itemsize

    if sub * row_bytes <= _TARGET_BYTES:
        # Small rows: whole rows per block, several sublane-dense rows each.
        tf = f
        bn = min(n, _MAX_BN, (_TARGET_BYTES // row_bytes) // sub * sub)
        if bn <= 0:
            bn = min(n, sub)
    else:
        # Big rows: one sublane group of rows, tile the feature axis.
        bn = min(n, sub)
        tf = (_TARGET_BYTES // max(1, _round_up(bn, sub) * itemsize)) // _LANE * _LANE
        tf = max(_LANE, min(tf, _round_up(f, _LANE)))
        if tf >= f:
            tf = f

    # v7x has two TensorCores: make sure the (parallel) grid has >= 2 steps
    # whenever the tensor is splittable.
    if pl.cdiv(f, tf) * pl.cdiv(n, bn) < 2:
        if bn == n and n > sub:
            bn = max(sub, (n // 2) // sub * sub)
        elif tf == f and f >= 2 * _LANE:
            tf = _round_up(pl.cdiv(f, 2), _LANE)
    return bn, tf, sub


def _apply_row_scales(x, scales, *, donate=False):
    """Returns x * scales broadcast over all non-batch dims (scales: (N,) f32)."""
    orig_shape = x.shape
    n = x.shape[0]
    f = max(1, int(math.prod(x.shape[1:])))
    itemsize = jnp.dtype(x.dtype).itemsize

    x2 = x.reshape(n, f)
    scales2 = scales.astype(jnp.float32).reshape(n, 1)

    bn, tf, sub = _choose_tiles(n, f, itemsize)
    nb = pl.cdiv(n, bn)
    nf = pl.cdiv(f, tf)

    # Per-batch-block redirect table: a block whose rows are all dropped reads
    # the most recent kept (already resident) x block instead, so Pallas skips
    # the HBM fetch; its scales are all zero so the output is still zero.
    # (Matches torch for finite inputs; NaN/Inf in *other* rows would leak a
    # NaN*0 into a fully-dropped row, which we accept.)
    keep = scales2[:, 0] > 0.0
    pad = nb * bn - n
    keep_blk = jnp.any(jnp.pad(keep, (0, pad)).reshape(nb, bn), axis=1)
    blk_idx = jnp.arange(nb, dtype=jnp.int32)
    src_blk = jax.lax.cummax(
        jnp.where(keep_blk, blk_idx, jnp.int32(0)), axis=0).astype(jnp.int32)

    # VMEM budget: double-buffered in + out data blocks, scale blocks, margin.
    blk_bytes = _round_up(bn, sub) * _round_up(tf, _LANE) * itemsize
    scale_bytes = _round_up(bn, 8) * _LANE * 4
    vmem_limit = int(min(48 << 20,
                         max(16 << 20, 4 * blk_bytes + 2 * scale_bytes + (4 << 20))))

    grid_spec = pltpu.PrefetchScalarGridSpec(
        num_scalar_prefetch=1,
        grid=(nf, nb),                      # batch innermost -> dropped-block reads elided
        in_specs=[
            pl.BlockSpec((bn, 1), lambda fi, bi, src: (bi, 0)),
            pl.BlockSpec((bn, tf), lambda fi, bi, src: (src[bi], fi)),
        ],
        out_specs=pl.BlockSpec((bn, tf), lambda fi, bi, src: (bi, fi)),
    )

    out2 = pl.pallas_call(
        _sd_kernel,
        out_shape=jax.ShapeDtypeStruct((n, f), x.dtype),
        grid_spec=grid_spec,
        compiler_params=pltpu.CompilerParams(
            dimension_semantics=("parallel", "parallel"),
            vmem_limit_bytes=vmem_limit,
        ),
        input_output_aliases=({2: 0} if donate else {}),
    )(src_blk, scales2, x2)

    return out2.reshape(orig_shape)


def stochastic_depth(x, p: float, mode: str, training: bool = True, *,
                     seed: int = 0, key=None, donate: bool = False):
    """JAX/Pallas equivalent of torchvision-style stochastic_depth."""
    if p < 0.0 or p > 1.0:
        raise ValueError(f"drop probability has to be between 0 and 1, but got {p}")
    if mode not in ("batch", "row"):
        raise ValueError(f"mode has to be either 'batch' or 'row', but got {mode}")
    if not training or p == 0.0:
        return x
    if p == 1.0:
        return jnp.zeros_like(x)

    survival_rate = 1.0 - p
    inv_survival = jnp.float32(1.0 / survival_rate)
    if key is None:
        key = jax.random.PRNGKey(seed)
    n = x.shape[0]

    if mode == "row":
        keep = jax.random.bernoulli(key, survival_rate, (n,))
        scales = keep.astype(jnp.float32) * inv_survival
        return _apply_row_scales(x, scales, donate=donate)

    # mode == "batch": one draw; a dropped batch never touches HBM for x.
    keep = jax.random.bernoulli(key, survival_rate)
    scales = jnp.full((n,), inv_survival, dtype=jnp.float32)
    return jax.lax.cond(
        keep,
        lambda ops: _apply_row_scales(ops[0], ops[1], donate=donate),
        lambda ops: jnp.zeros_like(ops[0]),
        (x, scales),
    )


class StochasticDepth:
    """See stochastic_depth(). Mirrors the PyTorch nn.Module interface."""

    def __init__(self, p: float, mode: str) -> None:
        self.p = p
        self.mode = mode
        self.training = True

    def __call__(self, x, *, seed: int = 0, key=None):
        return stochastic_depth(x, self.p, self.mode, self.training,
                                seed=seed, key=key)

    def __repr__(self) -> str:
        return f"{self.__class__.__name__}(p={self.p}, mode={self.mode})"


if __name__ == "__main__":
    key = jax.random.PRNGKey(0)
    x = jax.random.normal(key, (2, 4, 16, 16), dtype=jnp.float32)

    # row mode: each batch row independently kept (scaled by 1/(1-p)) or zeroed
    sd_row = StochasticDepth(p=0.3, mode="row")
    y_row = jax.block_until_ready(sd_row(x, seed=123))
    assert y_row.shape == x.shape and y_row.dtype == x.dtype
    surv = 1.0 - 0.3
    for i in range(x.shape[0]):
        row = y_row[i]
        is_zero = bool(jnp.all(row == 0.0))
        is_scaled = bool(jnp.allclose(row, x[i] / surv, rtol=1e-5, atol=1e-5))
        assert is_zero or is_scaled

    # batch mode: entire input either kept (scaled by 1/(1-p)) or zeroed
    sd_batch = StochasticDepth(p=0.5, mode="batch")
    y_batch = jax.block_until_ready(sd_batch(x, seed=7))
    is_zero = bool(jnp.all(y_batch == 0.0))
    is_scaled = bool(jnp.allclose(y_batch, x / 0.5, rtol=1e-5, atol=1e-5))
    assert is_zero or is_scaled

    # unaligned feature size (F = 35): full-row lane block path
    x_un = jax.random.normal(jax.random.PRNGKey(1), (4, 5, 7), dtype=jnp.float32)
    y_un = jax.block_until_ready(stochastic_depth(x_un, 0.4, "row", seed=11))
    surv_un = 1.0 - 0.4
    for i in range(x_un.shape[0]):
        row = y_un[i]
        is_zero = bool(jnp.all(row == 0.0))
        is_scaled = bool(jnp.allclose(row, x_un[i] / surv_un, rtol=1e-5, atol=1e-5))
        assert is_zero or is_scaled

    # bf16 input: dtype-aware sublane packing path
    x_bf = x.astype(jnp.bfloat16)
    y_bf = jax.block_until_ready(stochastic_depth(x_bf, 0.4, "row", seed=5))
    assert y_bf.dtype == jnp.bfloat16
    for i in range(x_bf.shape[0]):
        row = y_bf[i].astype(jnp.float32)
        ref = x_bf[i].astype(jnp.float32) / 0.6
        is_zero = bool(jnp.all(row == 0.0))
        is_scaled = bool(jnp.allclose(row, ref, rtol=2e-2, atol=2e-2))
        assert is_zero or is_scaled

    # p == 1.0: always zero (no NaN)
    y_p1 = jax.block_until_ready(stochastic_depth(x, 1.0, "row"))
    assert bool(jnp.all(y_p1 == 0.0))

    # eval mode: identity
    sd_row.training = False
    y_eval = jax.block_until_ready(sd_row(x))
    assert bool(jnp.array_equal(y_eval, x))

    print("KERNEL_OK")
</pallas_src>

<mosaic_0001>
module attributes {stable_mosaic.version = 11 : i64} {
  func.func @_sd_kernel(%arg0: i32, %arg1: i32, %arg2: memref<1xi32, #tpu.memory_space<smem>>, %arg3: memref<2x1xf32, #tpu.memory_space<vmem>>, %arg4: memref<2x512xf32, #tpu.memory_space<vmem>>, %arg5: memref<2x512xf32, #tpu.memory_space<vmem>>) attributes {dimension_semantics = [#tpu.dimension_semantics<parallel>, #tpu.dimension_semantics<parallel>], iteration_bounds = array<i64: 2, 1>, scalar_prefetch = 1 : i64, scratch_operands = 0 : i64, tpu.core_type = #tpu.core_type<tc>, window_params = [{transform_indices = @transform_0, window_bounds = array<i64: 2, 1>}, {transform_indices = @transform_1, window_bounds = array<i64: 2, 512>}, {transform_indices = @transform_2, window_bounds = array<i64: 2, 512>}]} {
    %c0 = arith.constant 0 : index
    %c0_0 = arith.constant 0 : index
    %0 = vector.load %arg4[%c0, %c0_0] : memref<2x512xf32, #tpu.memory_space<vmem>>, vector<2x512xf32>
    %c0_1 = arith.constant 0 : index
    %c0_2 = arith.constant 0 : index
    %1 = vector.load %arg3[%c0_1, %c0_2] : memref<2x1xf32, #tpu.memory_space<vmem>>, vector<2x1xf32>
    %2 = vector.broadcast %1 : vector<2x1xf32> to vector<2x512xf32>
    %3 = arith.mulf %0, %2 : vector<2x512xf32>
    %c0_3 = arith.constant 0 : index
    %c0_4 = arith.constant 0 : index
    %4 = vector.load %arg5[%c0_3, %c0_4] : memref<2x512xf32, #tpu.memory_space<vmem>>, vector<2x512xf32>
    tpu.vector_store %arg5[%c0_3, %c0_4], %3 {strides = array<i32>} : memref<2x512xf32, #tpu.memory_space<vmem>>, vector<2x512xf32>,
    return
  }
  func.func @transform_0(%arg0: i32, %arg1: i32, %arg2: memref<1xi32, #tpu.memory_space<smem>>) -> (i32, i32) {
    %c0_i32 = arith.constant 0 : i32
    %c0_i32_0 = arith.constant 0 : i32
    return %arg1, %c0_i32 : i32, i32
  }
  func.func @transform_1(%arg0: i32, %arg1: i32, %arg2: memref<1xi32, #tpu.memory_space<smem>>) -> (i32, i32) {
    %0 = arith.index_cast %arg1 : i32 to index
    %1 = memref.load %arg2[%0] : memref<1xi32, #tpu.memory_space<smem>>
    %c0_i32 = arith.constant 0 : i32
    return %1, %arg0 : i32, i32
  }
  func.func @transform_2(%arg0: i32, %arg1: i32, %arg2: memref<1xi32, #tpu.memory_space<smem>>) -> (i32, i32) {
    %c0_i32 = arith.constant 0 : i32
    return %arg1, %arg0 : i32, i32
  }
}

</mosaic_0001>

<llo_original>
// kernel: tpu_custom_call.1
$region0: #{tpu_custom_call.1}
  #allocation0 [shape = 'u32[]', space=smem, size = 0x4, offset = 0x4, fixed_abs, tag = 'smem constant byte address 0x4 - core index']
  #allocation1 [shape = 'u32[144,128]{1,0:T(1,128)}', space=vmem, size = 0x12000, scoped, tag = 'internal scratch']
  #allocation2 [shape = 's32[1]{0}', space=sflag, size = 0x4, scoped, tag = 'scoped memory for tpu_custom_call.1']
  #allocation3 [shape = 's32[1]{0:T(128)S(6)}', space=smem, size = 0x200, scoped, tag = 'prefetched SMEM operand 0']
  %s0 = inlined_call_operand.<no memory space> [shape: s32[1], index: 0, kind: input, shape index: {}]
  %s1 = inlined_call_operand.vmem [shape: f32[2,1], index: 1, kind: input, shape index: {}]
  %s2 = inlined_call_operand.hbm [shape: f32[2,1024], index: 2, kind: input, shape index: {}]
  %s3 = inlined_call_operand.hbm [shape: f32[2,1024], index: 3, kind: output, shape index: {}]
  %s4 = sld [smem:[#allocation0]]
  $region45: #{tpu_custom_call.1} parent=0
    _
  %s6 = ssub.s32 1, %s4
  %s7 = scalar_select 0, %s6, %s4
  %8 = sst [smem:[#allocation3]] %s0
  $region1: #{tpu_custom_call.1} parent=0
    #allocation4 [shape = 'u8[8192]{0}', space=vmem, size = 0x2000, scoped, tag = 'input window, operand 2']
    #allocation5 [shape = 's32[2]{0}', space=sflag, size = 0x8, scoped, tag = 'scoped memory for tpu_custom_call.1']
    #allocation6 [shape = 's32[2]{0}', space=sflag, size = 0x8, scoped, tag = 'scoped memory for tpu_custom_call.1']
    #allocation7 [shape = 'u8[8192]{0}', space=vmem, size = 0x2000, scoped, tag = 'output window, operand 0']
    %9 = vsyncpa [#allocation5], 0
    %s10 = scalar_lea.sflag [#allocation5], 1
    %11 = vsyncpa %s10, 0
    %12 = vsyncpa [#allocation6], 0
    %s13 = scalar_lea.sflag [#allocation6], 1
    %14 = vsyncpa %s13, 0
    loop: start=0, step=1, limit=4
    $region2: #{tpu_custom_call.1} parent=1 // loop_pre_header
      _
    $region3: #{tpu_custom_call.1} parent=1 // loop_header
      %s16 = sphi 0, %s20
      %p17 = scmp.ge.s32.totalorder %s16, 4
      %s23 = sphi 0, %s35
      %s24 = sphi 0, %s31
      %s25 = sphi 0, %s23
      %s26 = sphi 0, %s24
      %s27 = sphi 0, %s25
      %s28 = sphi 0, %s26
      %s38 = sphi 0, %s40
      %s41 = sphi 0, %s38
      %s42 = sphi 0, %s41
      %s58 = sphi 0, %s42
      %s68 = sphi 0, %s70
      %s71 = sphi 0, %s68
      %s72 = sphi 0, %s71
      %s88 = sphi 0, %s72
      %s96 = sphi 0, %s98
      %s99 = sphi 0, %s96
      %s100 = sphi 0, %s99
      %s116 = sphi 0, %s100
    $region4: #{tpu_custom_call.1} parent=1 // loop_header_branch
      %19 = sbr.rel (%p17) target = $region8
    $region5: #{tpu_custom_call.1} parent=1 // loop_body
      %s21 = ssub.s32 %s16, 1
      %s22 = ssub.s32 %s16, 2
      %s29 = sadd.s32 1, %s24
      %p30 = scmp.ge.s32.totalorder %s29, 1
      %s31 = scalar_select %p30, 0, %s29
      %s32 = sadd.s32 1, %s23
      %s33 = scalar_select %p30, %s32, %s23
      %p34 = scmp.ge.s32.totalorder %s33, 2
      %s35 = scalar_select %p34, 0, %s33
      %s36 = ssub.s32 %s24, %s31
      %p37 = scmp.eq.s32.totalorder %s36, 0
      %s39 = sadd.s32 %s38, 1
      %s40 = scalar_select %p37, %s38, %s39
      %p43 = pneg %p37
      %p44 = scmp.eq.s32.totalorder %s16, 1
      %p45 = por %p43, %p44
      %p46 = scmp.ne.s32.totalorder %s38, %s41
      %p47 = scmp.eq.s32.totalorder %s16, 0
      %p48 = por %p46, %p47
      %p49 = scmp.ne.s32.totalorder %s38, %s41
      %p50 = scmp.eq.s32.totalorder %s21, 1
      %p51 = por %p49, %p50
      %p52 = scmp.ne.s32.totalorder %s41, %s42
      %p53 = scmp.eq.s32.totalorder %s21, 0
      %p54 = por %p52, %p53
      %p55 = scmp.ne.s32.totalorder %s41, %s42
      %p56 = scmp.eq.s32.totalorder %s22, 1
      %p57 = por %p55, %p56
      %p59 = scmp.ne.s32.totalorder %s42, %s58
      %p60 = scmp.eq.s32.totalorder %s22, 0
      %p61 = por %p59, %p60
      %s62 = sld [smem:[#allocation3 + %s24]]
      %s63 = sld [smem:[#allocation3 + %s31]]
      %s64 = ssub.s32 %s62, %s63
      %s65 = ssub.s32 %s23, %s35
      %s66 = sor.u32 %s64, %s65
      %p67 = scmp.eq.s32.totalorder %s66, 0
      %s69 = sadd.s32 %s68, 1
      %s70 = scalar_select %p67, %s68, %s69
      %p73 = pneg %p67
      %p74 = scmp.eq.s32.totalorder %s16, 1
      %p75 = por %p73, %p74
      %p76 = scmp.ne.s32.totalorder %s68, %s71
      %p77 = scmp.eq.s32.totalorder %s16, 0
      %p78 = por %p76, %p77
      %p79 = scmp.ne.s32.totalorder %s68, %s71
      %p80 = scmp.eq.s32.totalorder %s21, 1
      %p81 = por %p79, %p80
      %p82 = scmp.ne.s32.totalorder %s71, %s72
      %p83 = scmp.eq.s32.totalorder %s21, 0
      %p84 = por %p82, %p83
      %p85 = scmp.ne.s32.totalorder %s71, %s72
      %p86 = scmp.eq.s32.totalorder %s22, 1
      %p87 = por %p85, %p86
      %p89 = scmp.ne.s32.totalorder %s72, %s88
      %p90 = scmp.eq.s32.totalorder %s22, 0
      %p91 = por %p89, %p90
      %s92 = ssub.s32 %s24, %s31
      %s93 = ssub.s32 %s23, %s35
      %s94 = sor.u32 %s92, %s93
      %p95 = scmp.eq.s32.totalorder %s94, 0
      %s97 = sadd.s32 %s96, 1
      %s98 = scalar_select %p95, %s96, %s97
      %p101 = pneg %p95
      %p102 = scmp.eq.s32.totalorder %s16, 1
      %p103 = por %p101, %p102
      %p104 = scmp.ne.s32.totalorder %s96, %s99
      %p105 = scmp.eq.s32.totalorder %s16, 0
      %p106 = por %p104, %p105
      %p107 = scmp.ne.s32.totalorder %s96, %s99
      %p108 = scmp.eq.s32.totalorder %s21, 1
      %p109 = por %p107, %p108
      %p110 = scmp.ne.s32.totalorder %s99, %s100
      %p111 = scmp.eq.s32.totalorder %s21, 0
      %p112 = por %p110, %p111
      %p113 = scmp.ne.s32.totalorder %s99, %s100
      %p114 = scmp.eq.s32.totalorder %s22, 1
      %p115 = por %p113, %p114
      %p117 = scmp.ne.s32.totalorder %s100, %s116
      %p118 = scmp.eq.s32.totalorder %s22, 0
      %p119 = por %p117, %p118
      %p120 = scmp.le.s32.totalorder 1, %s16
      %p121 = scmp.lt.s32.totalorder %s16, 3
      %p122 = pnand %p120, %p121
      %p123 = pneg %p122
      // Predicated region
      $region9: #{tpu_custom_call.1} parent=5 // pred_check
        _
      $region10: #{tpu_custom_call.1} parent=5 // pred_check_branch
        %125 = sbr.rel (%p122) target = $region12
      $region11: #{tpu_custom_call.1} parent=5 // pred_region
        %s126 = ssub.s32 %s16, 1
        // Predicated region
        $region13: #{tpu_custom_call.1} parent=11 // pred_check
          %p127 = pneg %p54
        $region14: #{tpu_custom_call.1} parent=11 // pred_check_branch
          %129 = sbr.rel (%p127) target = $region16
        $region15: #{tpu_custom_call.1} parent=11 // pred_region
          %p130 = scmp.lt.s32.totalorder %s26, 0
          %s131 = scalar_select %p130, %s26, 0
          %s132 = smul.addr %s131, 2
          %s133 = scalar_lea.vmem %s1, %s132
        $region16: #{tpu_custom_call.1} parent=11 // pred_fallthru
          _
      $region12: #{tpu_custom_call.1} parent=5 // pred_fallthru
        _
      %p134 = scmp.lt.s32.totalorder %s16, 2
      // Predicated region
      $region17: #{tpu_custom_call.1} parent=5 // pred_check
        %p135 = pneg %p134
      $region18: #{tpu_custom_call.1} parent=5 // pred_check_branch
        %137 = sbr.rel (%p135) target = $region20
      $region19: #{tpu_custom_call.1} parent=5 // pred_region
        // Predicated region
        $region21: #{tpu_custom_call.1} parent=19 // pred_check
          %p138 = pneg %p78
        $region22: #{tpu_custom_call.1} parent=19 // pred_check_branch
          %140 = sbr.rel (%p138) target = $region24
        $region23: #{tpu_custom_call.1} parent=19 // pred_region
          %s141 = sand.u32 %s68, 1
          %s142 = scalar_lea.sflag [#allocation5], %s141
          %s143 = sand.u32 %s68, 1
          %s144 = smul.addr %s143, 8
          %s145 = scalar_lea.vmem [#allocation4], %s144
          %s146 = sld [smem:[#allocation3 + %s24]]
          %s147 = smul.u32 4, %s23
          %s149 = ssub.s32 128, 128
          %150 = vsyncadd %s142, %s149
          %s151 = smul.addr %s146, 8
          %s152 = sadd.s32 %s147, %s151
          %s153 = smul.addr %s152, 32
          %s154 = scalar_lea.hbm %s2, %s153
          %s156 = sshll.u32 %s145, 4
          %s157 = int_to_ptr.vmem [resolvable:$true] %s156
          %159 = dma.hbm_to_vmem [thread:$0]  %s154, 128, %s157, %s142
        $region24: #{tpu_custom_call.1} parent=19 // pred_fallthru
          _
      $region20: #{tpu_custom_call.1} parent=5 // pred_fallthru
        _
      %p160 = scmp.le.s32.totalorder 1, %s16
      %p161 = scmp.lt.s32.totalorder %s16, 3
      %p162 = pnand %p160, %p161
      %p163 = pneg %p162
      // Predicated region
      $region25: #{tpu_custom_call.1} parent=5 // pred_check
        _
      $region26: #{tpu_custom_call.1} parent=5 // pred_check_branch
        %165 = sbr.rel (%p162) target = $region28
      $region27: #{tpu_custom_call.1} parent=5 // pred_region
        %s166 = ssub.s32 %s16, 1
        %s167 = sand.u32 %s71, 1
        %s168 = scalar_lea.sflag [#allocation5], %s167
        %s169 = sand.u32 %s71, 1
        %s170 = smul.addr %s169, 8
        %s171 = scalar_lea.vmem [#allocation4], %s170
        // Predicated region
        $region29: #{tpu_custom_call.1} parent=27 // pred_check
          %p172 = pneg %p84
        $region30: #{tpu_custom_call.1} parent=27 // pred_check_branch
          %174 = sbr.rel (%p172) target = $region32
        $region31: #{tpu_custom_call.1} parent=27 // pred_region
          %175 = dma.done %s168, 128
        $region32: #{tpu_custom_call.1} parent=27 // pred_fallthru
          _
        %p176 = scmp.lt.s32.totalorder %s26, 0
        %s177 = scalar_select %p176, %s26, 0
        %s178 = smul.addr %s177, 2
        %s179 = scalar_lea.vmem %s1, %s178
        %p180 = pneg %p54
        %p181 = pneg %p51
        %s182 = sand.u32 %s71, 1
        %s183 = scalar_lea.sflag [#allocation5], %s182
        %s184 = sand.u32 %s71, 1
        %s185 = smul.addr %s184, 8
        %s186 = scalar_lea.vmem [#allocation4], %s185
        %p187 = pneg %p84
        %p188 = pneg %p81
        %p189 = pneg %p112
        %p190 = pneg %p109
        %s191 = sand.u32 %s99, 1
        %s192 = scalar_lea.sflag [#allocation6], %s191
        %s193 = sand.u32 %s99, 1
        %s194 = smul.addr %s193, 8
        %s195 = scalar_lea.vmem [#allocation7], %s194
        %p196 = scmp.lt.s32.totalorder %s26, 0
        %s197 = scalar_select %p196, %s26, 0
        %s198 = smul.addr %s197, 2
        %s199 = scalar_lea.vmem %s1, %s198
        %s200 = sld [smem:[#allocation3 + %s26]]
        %s201 = smul.u32 4, %s25
        %s202 = smul.u32 4, %s25
        %v203 = vld [vmem:[%s171] sm:$0xff]
        %v204 = vld [vmem:[%s199] sm:$0x3]
        %206 = vset.pattern.permute.xlu0 0
        %207 = vperm.xlu0 %206, %v204
        %v208 = vpop.permute.xlu0 %207
        %v210 = vunpack.c.l.s4 269488144
        %v211 = vunpack.c.0.s8 %v210
        %v212 = vlaneseq
        %v213 = vshrl.u32 %v212, 7
        %v214 = vsub.s32 %v211, %v213
        %v215 = vrot.slane %v208, %v214
        %v217 = vmul.f32 %v203, %v215
        %218 = vst [vmem:[%s195] sm:$0xff] %v217
        %s219 = sand.u32 %s99, 1
        %s220 = scalar_lea.sflag [#allocation6], %s219
        %s221 = sand.u32 %s99, 1
        %s222 = smul.addr %s221, 8
        %s223 = scalar_lea.vmem [#allocation7], %s222
        // Predicated region
        $region33: #{tpu_custom_call.1} parent=27 // pred_check
          %p224 = pneg %p109
        $region34: #{tpu_custom_call.1} parent=27 // pred_check_branch
          %226 = sbr.rel (%p224) target = $region36
        $region35: #{tpu_custom_call.1} parent=27 // pred_region
          %s227 = smul.u32 4, %s25
          %s229 = ssub.s32 128, 128
          %230 = vsyncadd %s220, %s229
          %s231 = smul.addr %s26, 8
          %s232 = sadd.s32 %s227, %s231
          %s233 = smul.addr %s232, 32
          %s234 = scalar_lea.hbm %s3, %s233
          %s236 = sshll.u32 %s223, 4
          %s237 = int_to_ptr.vmem [resolvable:$true] %s236
          %239 = dma.vmem_to_hbm [thread:$0]  %s237, 128, %s234, %s220
        $region36: #{tpu_custom_call.1} parent=27 // pred_fallthru
          _
      $region28: #{tpu_custom_call.1} parent=5 // pred_fallthru
        _
      %p240 = scmp.le.s32.totalorder 2, %s16
      // Predicated region
      $region37: #{tpu_custom_call.1} parent=5 // pred_check
        %p241 = pneg %p240
      $region38: #{tpu_custom_call.1} parent=5 // pred_check_branch
        %243 = sbr.rel (%p241) target = $region40
      $region39: #{tpu_custom_call.1} parent=5 // pred_region
        %s244 = ssub.s32 %s16, 2
        // Predicated region
        $region41: #{tpu_custom_call.1} parent=39 // pred_check
          %p245 = pneg %p115
        $region42: #{tpu_custom_call.1} parent=39 // pred_check_branch
          %247 = sbr.rel (%p245) target = $region44
        $region43: #{tpu_custom_call.1} parent=39 // pred_region
          %s248 = sand.u32 %s100, 1
          %s249 = scalar_lea.sflag [#allocation6], %s248
          %s250 = sand.u32 %s100, 1
          %s251 = smul.addr %s250, 8
          %s252 = scalar_lea.vmem [#allocation7], %s251
          %253 = dma.done %s249, 128
        $region44: #{tpu_custom_call.1} parent=39 // pred_fallthru
          _
      $region40: #{tpu_custom_call.1} parent=5 // pred_fallthru
        _
    $region6: #{tpu_custom_call.1} parent=1 // loop_footer
      %s20 = sadd.s32 1, %s16
    $region7: #{tpu_custom_call.1} parent=1 // loop_footer_branch
      %15 = sbr.rel target = $region3
    $region8: #{tpu_custom_call.1} parent=1 // loop_exit
      _
    %254 = vsyncpa [#allocation5], 1
    %s255 = scalar_lea.sflag [#allocation5], 1
    %256 = vsyncpa %s255, 1
    %257 = vsyncpa [#allocation6], 1
    %s258 = scalar_lea.sflag [#allocation6], 1
    %259 = vsyncpa %s258, 1

</llo_original>
